<compile_context>
chip_gen: v7x
topology: tpu7x:2x2x1
jax: 0.10.0
libtpu: 0.0.40
codegen_flags: <defaults>
</compile_context>

<pallas_src>
import jax
import jax.numpy as jnp
from jax.experimental import pallas as pl
from jax.experimental.pallas import tpu as pltpu

N_REGIONS = 36   # number of image regions
GLIMPSES = 2     # attention glimpses per region on the stack
STACK_LEN = 4    # attention-stack depth


def _describe_kernel(stack_ptr_ref, att_stack_ref, vision_feat_ref, mem_out_ref):
    # stack_ptr_ref   : (bb, S)
    # att_stack_ref   : (bb, S, G, N)   -- N in the lane dim
    # vision_feat_ref : (bb, N, D)
    # mem_out_ref     : (bb, G*D)       -- lane-dense flattened output
    ptr = stack_ptr_ref[...]                         # (bb, S)
    stk = att_stack_ref[...]                         # (bb, S, G, N)
    vf = vision_feat_ref[...]                        # (bb, N, D)
    G = stk.shape[2]

    # _read_from_stack: soft-select over the stack axis with the (possibly
    # soft) one-hot pointer.  S is a leading axis here, so the reduction is
    # plain vreg multiply-adds and `att` is already (b, G, N).
    att = jnp.sum(stk * ptr[:, :, None, None], axis=1)           # (bb, G, N)

    # (G, N) @ (N, D) per batch row; contraction on att's lane dim / vf's
    # sublane dim -> no relayout before the MXU push.  f32 accumulation.
    mem = jnp.einsum("bgn,bnd->bgd", att, vf,
                     preferred_element_type=jnp.float32)         # (bb, G, D)

    # Flatten glimpses into the lane dim (matches torch .view(B, -1)) and
    # write the whole block in one store.
    mem_flat = jnp.concatenate([mem[:, g, :] for g in range(G)], axis=-1)
    mem_out_ref[...] = mem_flat.astype(mem_out_ref.dtype)


def describe_module(vision_feat, feat, feat_edge, c_i, relation_mask,
                    att_stack, stack_ptr, mem_in):
    """Mirrors DescribeModule.forward; feat/feat_edge/c_i/relation_mask/mem_in are unused."""
    del feat, feat_edge, c_i, relation_mask, mem_in
    B, N, D = vision_feat.shape
    _, _, G, S = att_stack.shape

    # Layout plumbing in the wrapper (single cheap XLA transpose, tiny tensor):
    # put N in the lane dim, G in the sublane dim, S as a leading reduction dim.
    att_stack_r = jnp.transpose(att_stack, (0, 3, 2, 1))          # (B, S, G, N)

    # Batch blocking: fully fuse small batches into one grid step; for large,
    # 8-divisible batches use 8 rows per step (full sublanes and >=2 parallel
    # blocks so both v7x TensorCores get work).
    if B >= 16 and B % 8 == 0:
        bb = 8
    else:
        bb = B
    grid = (B // bb,)

    mem_out = pl.pallas_call(
        _describe_kernel,
        out_shape=jax.ShapeDtypeStruct((B, G * D), vision_feat.dtype),
        grid_spec=pltpu.PrefetchScalarGridSpec(
            num_scalar_prefetch=0,
            grid=grid,
            in_specs=[
                pl.BlockSpec((bb, S), lambda i: (i, 0)),              # stack_ptr
                pl.BlockSpec((bb, S, G, N), lambda i: (i, 0, 0, 0)),  # att_stack (re-laid)
                pl.BlockSpec((bb, N, D), lambda i: (i, 0, 0)),        # vision_feat
            ],
            out_specs=pl.BlockSpec((bb, G * D), lambda i: (i, 0)),    # mem_out (lane-dense)
        ),
        compiler_params=pltpu.CompilerParams(
            dimension_semantics=("parallel",)),
    )(stack_ptr, att_stack_r, vision_feat)

    # att_stack and stack_ptr are passed through unchanged, as in the PyTorch module.
    return att_stack, stack_ptr, mem_out


if __name__ == "__main__":
    key = jax.random.PRNGKey(0)
    B, D = 2, 32
    k1, k2, k3, k4 = jax.random.split(key, 4)

    vision_feat = jax.random.normal(k1, (B, N_REGIONS, D), dtype=jnp.float32)
    att_stack = jax.random.normal(
        k2, (B, N_REGIONS, GLIMPSES, STACK_LEN), dtype=jnp.float32)
    ptr_idx = jax.random.randint(k3, (B,), 0, STACK_LEN)
    stack_ptr = jax.nn.one_hot(ptr_idx, STACK_LEN, dtype=jnp.float32)

    # Unused-by-forward inputs, included only for signature parity.
    feat = jax.random.normal(k4, (B, 8, 16), dtype=jnp.float32)
    feat_edge = None
    c_i = None
    relation_mask = None
    mem_in = jnp.zeros((B, GLIMPSES * D), dtype=jnp.float32)

    att_stack_out, stack_ptr_out, mem_out = describe_module(
        vision_feat, feat, feat_edge, c_i, relation_mask,
        att_stack, stack_ptr, mem_in)
    jax.block_until_ready(mem_out)

    # Pure-JAX reference check.
    att_ref = jnp.sum(att_stack * stack_ptr[:, None, None, :], axis=-1)   # (B, N, G)
    mem_ref = jnp.einsum("bng,bnd->bgd", att_ref, vision_feat).reshape(B, -1)
    assert mem_out.shape == (B, GLIMPSES * D)
    assert jnp.allclose(mem_out, mem_ref, atol=1e-5), "kernel/reference mismatch"
    assert jnp.array_equal(att_stack_out, att_stack)
    assert jnp.array_equal(stack_ptr_out, stack_ptr)

    print("KERNEL_OK")
</pallas_src>

<mosaic_0001>
module attributes {stable_mosaic.version = 11 : i64} {
  func.func @_describe_kernel(%arg0: i32, %arg1: memref<2x4xf32, #tpu.memory_space<vmem>>, %arg2: memref<2x4x2x36xf32, #tpu.memory_space<vmem>>, %arg3: memref<2x36x32xf32, #tpu.memory_space<vmem>>, %arg4: memref<2x64xf32, #tpu.memory_space<vmem>>) attributes {dimension_semantics = [#tpu.dimension_semantics<parallel>], iteration_bounds = array<i64: 1>, scalar_prefetch = 0 : i64, scratch_operands = 0 : i64, tpu.core_type = #tpu.core_type<tc>, window_params = [{transform_indices = @transform_0, window_bounds = array<i64: 2, 4>}, {transform_indices = @transform_1, window_bounds = array<i64: 2, 4, 2, 36>}, {transform_indices = @transform_2, window_bounds = array<i64: 2, 36, 32>}, {transform_indices = @transform_3, window_bounds = array<i64: 2, 64>}]} {
    %c0 = arith.constant 0 : index
    %c0_0 = arith.constant 0 : index
    %0 = vector.load %arg1[%c0, %c0_0] : memref<2x4xf32, #tpu.memory_space<vmem>>, vector<2x4xf32>
    %c0_1 = arith.constant 0 : index
    %c0_2 = arith.constant 0 : index
    %c0_3 = arith.constant 0 : index
    %c0_4 = arith.constant 0 : index
    %1 = vector.load %arg2[%c0_1, %c0_2, %c0_3, %c0_4] : memref<2x4x2x36xf32, #tpu.memory_space<vmem>>, vector<2x4x2x36xf32>
    %c0_5 = arith.constant 0 : index
    %c0_6 = arith.constant 0 : index
    %c0_7 = arith.constant 0 : index
    %2 = vector.load %arg3[%c0_5, %c0_6, %c0_7] : memref<2x36x32xf32, #tpu.memory_space<vmem>>, vector<2x36x32xf32>
    %3 = vector.shape_cast %0 : vector<2x4xf32> to vector<2x4x1x1xf32>
    %4 = vector.broadcast %3 : vector<2x4x1x1xf32> to vector<2x4x2x36xf32>
    %5 = arith.mulf %1, %4 : vector<2x4x2x36xf32>
    %cst = arith.constant dense<0.000000e+00> : vector<2x2x36xf32>
    %6 = vector.multi_reduction <add>, %5, %cst [1] : vector<2x4x2x36xf32> to vector<2x2x36xf32>
    "tpu.trace_start"() <{level = 10 : i32, message = "bgn,bnd->bgd"}> : () -> ()
    %cst_8 = arith.constant dense<0.000000e+00> : vector<2x2x32xf32>
    %7 = tpu.matmul %6, %2, %cst_8 {dimension_numbers = #tpu.dot_dimension_numbers<[2], [1], [1], [2], [0, 0, 0, 1, 1, 2], [0], [0]>} : vector<2x2x36xf32>, vector<2x36x32xf32>, vector<2x2x32xf32> -> vector<2x2x32xf32>
    "tpu.trace_stop"() : () -> ()
    %8 = vector.extract_strided_slice %7 {offsets = [0, 0, 0], sizes = [2, 1, 32], strides = [1, 1, 1]} : vector<2x2x32xf32> to vector<2x1x32xf32>
    %9 = vector.shape_cast %8 : vector<2x1x32xf32> to vector<2x32xf32>
    %10 = vector.extract_strided_slice %7 {offsets = [0, 1, 0], sizes = [2, 1, 32], strides = [1, 1, 1]} : vector<2x2x32xf32> to vector<2x1x32xf32>
    %11 = vector.shape_cast %10 : vector<2x1x32xf32> to vector<2x32xf32>
    %12 = tpu.concatenate %9, %11 in 1 : vector<2x32xf32>, vector<2x32xf32> -> vector<2x64xf32>
    %c0_9 = arith.constant 0 : index
    %c0_10 = arith.constant 0 : index
    %13 = vector.load %arg4[%c0_9, %c0_10] : memref<2x64xf32, #tpu.memory_space<vmem>>, vector<2x64xf32>
    tpu.vector_store %arg4[%c0_9, %c0_10], %12 {strides = array<i32>} : memref<2x64xf32, #tpu.memory_space<vmem>>, vector<2x64xf32>,
    return
  }
  func.func @transform_0(%arg0: i32) -> (i32, i32) {
    %c0_i32 = arith.constant 0 : i32
    %c0_i32_0 = arith.constant 0 : i32
    return %arg0, %c0_i32 : i32, i32
  }
  func.func @transform_1(%arg0: i32) -> (i32, i32, i32, i32) {
    %c0_i32 = arith.constant 0 : i32
    %c0_i32_0 = arith.constant 0 : i32
    %c0_i32_1 = arith.constant 0 : i32
    %c0_i32_2 = arith.constant 0 : i32
    return %arg0, %c0_i32, %c0_i32_0, %c0_i32_1 : i32, i32, i32, i32
  }
  func.func @transform_2(%arg0: i32) -> (i32, i32, i32) {
    %c0_i32 = arith.constant 0 : i32
    %c0_i32_0 = arith.constant 0 : i32
    %c0_i32_1 = arith.constant 0 : i32
    return %arg0, %c0_i32, %c0_i32_0 : i32, i32, i32
  }
  func.func @transform_3(%arg0: i32) -> (i32, i32) {
    %c0_i32 = arith.constant 0 : i32
    %c0_i32_0 = arith.constant 0 : i32
    return %arg0, %c0_i32 : i32, i32
  }
}

</mosaic_0001>

<llo_original>
// kernel: tpu_custom_call.1
$region0: #{tpu_custom_call.1}
  #allocation0 [shape = 'u32[]', space=smem, size = 0x4, offset = 0x4, fixed_abs, tag = 'smem constant byte address 0x4 - core index']
  #allocation1 [shape = 'u32[144,128]{1,0:T(1,128)}', space=vmem, size = 0x12000, scoped, tag = 'internal scratch']
  %s0 = inlined_call_operand.vmem [shape: f32[2,4], index: 0, kind: input, shape index: {}]
  %s1 = inlined_call_operand.vmem [shape: f32[2,4,2,36], index: 1, kind: input, shape index: {}]
  %s2 = inlined_call_operand.vmem [shape: f32[2,36,32], index: 2, kind: input, shape index: {}]
  %s3 = inlined_call_operand.hbm [shape: f32[2,64], index: 3, kind: output, shape index: {}]
  %s4 = sld [smem:[#allocation0]]
  $region22: #{tpu_custom_call.1} parent=0
    _
  %s6 = ssub.s32 1, %s4
  %s7 = scalar_select 0, %s6, %s4
  $region1: #{tpu_custom_call.1} parent=0
    #allocation2 [shape = 'u8[1024]{0}', space=vmem, size = 0x400, scoped, tag = 'output window, operand 0, single buffered']
    #allocation3 [shape = 's32[1]{0}', space=sflag, size = 0x4, scoped, tag = 'scoped memory for tpu_custom_call.1']
    %8 = vsyncpa [#allocation3], 0
    // Predicated region
    $region2: #{tpu_custom_call.1} parent=1 // pred_check
      _
    $region3: #{tpu_custom_call.1} parent=1 // pred_check_branch
      %10 = sbr.rel (0) target = $region5
    $region4: #{tpu_custom_call.1} parent=1 // pred_region
      _
    $region5: #{tpu_custom_call.1} parent=1 // pred_fallthru
      _
    // Predicated region
    $region6: #{tpu_custom_call.1} parent=1 // pred_check
      _
    $region7: #{tpu_custom_call.1} parent=1 // pred_check_branch
      %12 = sbr.rel (0) target = $region9
    $region8: #{tpu_custom_call.1} parent=1 // pred_region
      _
    $region9: #{tpu_custom_call.1} parent=1 // pred_fallthru
      _
    // Predicated region
    $region10: #{tpu_custom_call.1} parent=1 // pred_check
      _
    $region11: #{tpu_custom_call.1} parent=1 // pred_check_branch
      %14 = sbr.rel (0) target = $region13
    $region12: #{tpu_custom_call.1} parent=1 // pred_region
      _
    $region13: #{tpu_custom_call.1} parent=1 // pred_fallthru
      _
    %v15 = vld [vmem:[%s0] sm:$0x3]
    %v16 = vld [vmem:[%s1] sm:$0x3]
    %v17 = vld [vmem:[%s1 + $0x2] sm:$0x3]
    %v18 = vld [vmem:[%s1 + $0x4] sm:$0x3]
    %v19 = vld [vmem:[%s1 + $0x6] sm:$0x3]
    %v20 = vld [vmem:[%s1 + $0x8] sm:$0x3]
    %v21 = vld [vmem:[%s1 + $0xa] sm:$0x3]
    %v22 = vld [vmem:[%s1 + $0xc] sm:$0x3]
    %v23 = vld [vmem:[%s1 + $0xe] sm:$0x3]
    %v24 = vld [vmem:[%s2] sm:$0xff]
    %v25 = vld [vmem:[%s2 + $0x8] sm:$0xff]
    %v26 = vld [vmem:[%s2 + $0x10] sm:$0xff]
    %v27 = vld [vmem:[%s2 + $0x18] sm:$0xff]
    %v28 = vld [vmem:[%s2 + $0x20] sm:$0xf]
    %v29 = vld [vmem:[%s2 + $0x28] sm:$0xff]
    %v30 = vld [vmem:[%s2 + $0x30] sm:$0xff]
    %v31 = vld [vmem:[%s2 + $0x38] sm:$0xff]
    %v32 = vld [vmem:[%s2 + $0x40] sm:$0xff]
    %v33 = vld [vmem:[%s2 + $0x48] sm:$0xf]
    %v34 = vlaneseq
    %v35 = vshrl.u32 %v34, 7
    %v36 = vsub.s32 0, %v35
    %v37 = vrot.slane %v15, %v36
    %39 = vbcast.lane.b32.xlu0 %v37, 256
    %v40 = vpop.permute.xlu0 %39
    %v41 = vlaneseq
    %v42 = vshrl.u32 %v41, 7
    %v43 = vsub.s32 1, %v42
    %v44 = vrot.slane %v15, %v43
    %46 = vbcast.lane.b32.xlu0 %v44, 256
    %v47 = vpop.permute.xlu0 %46
    %v48 = vlaneseq
    %v49 = vshrl.u32 %v48, 7
    %v50 = vsub.s32 0, %v49
    %v51 = vrot.slane %v40, %v50
    %v52 = vlaneseq
    %v53 = vshrl.u32 %v52, 7
    %v54 = vsub.s32 1, %v53
    %v55 = vrot.slane %v40, %v54
    %v56 = vlaneseq
    %v57 = vshrl.u32 %v56, 7
    %v58 = vsub.s32 2, %v57
    %v59 = vrot.slane %v40, %v58
    %v60 = vlaneseq
    %v61 = vshrl.u32 %v60, 7
    %v62 = vsub.s32 3, %v61
    %v63 = vrot.slane %v40, %v62
    %v64 = vlaneseq
    %v65 = vshrl.u32 %v64, 7
    %v66 = vsub.s32 0, %v65
    %v67 = vrot.slane %v47, %v66
    %v68 = vlaneseq
    %v69 = vshrl.u32 %v68, 7
    %v70 = vsub.s32 1, %v69
    %v71 = vrot.slane %v47, %v70
    %v72 = vlaneseq
    %v73 = vshrl.u32 %v72, 7
    %v74 = vsub.s32 2, %v73
    %v75 = vrot.slane %v47, %v74
    %v76 = vlaneseq
    %v77 = vshrl.u32 %v76, 7
    %v78 = vsub.s32 3, %v77
    %v79 = vrot.slane %v47, %v78
    %v80 = vmul.f32 %v16, %v51
    %v81 = vmul.f32 %v17, %v55
    %v82 = vmul.f32 %v18, %v59
    %v83 = vmul.f32 %v19, %v63
    %v84 = vmul.f32 %v20, %v67
    %v85 = vmul.f32 %v21, %v71
    %v86 = vmul.f32 %v22, %v75
    %v87 = vmul.f32 %v23, %v79
    %vm88 = vcmask 287744
    %v89 = vsel %vm88, %v80, 0.0
    %v90 = vsel %vm88, %v81, 0.0
    %v91 = vadd.f32 %v89, %v90
    %v92 = vsel %vm88, %v82, 0.0
    %v93 = vadd.f32 %v91, %v92
    %v94 = vsel %vm88, %v83, 0.0
    %v95 = vadd.f32 %v93, %v94
    %v96 = vsel %vm88, %v84, 0.0
    %v97 = vsel %vm88, %v85, 0.0
    %v98 = vadd.f32 %v96, %v97
    %v99 = vsel %vm88, %v86, 0.0
    %v100 = vadd.f32 %v98, %v99
    %v101 = vsel %vm88, %v87, 0.0
    %v102 = vadd.f32 %v100, %v101
    %vm103 = vcmask 293888
    %v105 = vsel %vm103, %v95, 0
    %vm107 = vcmask 1043456
    %v109 = vsel %vm107, %v28, 0
    %111 = vmatprep.subr.mxu0 0.0
    %112 = vmatpush1.msra.mxu0 %v24
    %113 = vmatprep.subr.mxu0 0.0
    %114 = vmatpush1.msra.mxu0 %v25
    %115 = vmatprep.subr.mxu0 0.0
    %116 = vmatpush1.msra.mxu0 %v26
    %117 = vmatprep.subr.mxu0 0.0
    %118 = vmatpush1.msra.mxu0 %v27
    %119 = vmatprep.subr.mxu0 0.0
    %120 = vmatpush1.msra.mxu0 %v109
    %121 = vmatprep.subr.mxu0 0.0
    %122 = vmatpush1.msra.mxu0 0.0
    %123 = vmatprep.subr.mxu0 0.0
    %124 = vmatpush1.msra.mxu0 0.0
    %125 = vmatprep.subr.mxu0 0.0
    %126 = vmatpush1.msra.mxu0 0.0
    %127 = vmatprep.subr.mxu0 0.0
    %128 = vmatpush1.msra.mxu0 0.0
    %129 = vmatprep.subr.mxu0 0.0
    %130 = vmatpush1.msra.mxu0 0.0
    %131 = vmatprep.subr.mxu0 0.0
    %132 = vmatpush1.msra.mxu0 0.0
    %133 = vmatprep.subr.mxu0 0.0
    %134 = vmatpush1.msra.mxu0 0.0
    %135 = vmatprep.subr.mxu0 0.0
    %136 = vmatpush1.msra.mxu0 0.0
    %137 = vmatprep.subr.mxu0 0.0
    %138 = vmatpush1.msra.mxu0 0.0
    %139 = vmatprep.subr.mxu0 0.0
    %140 = vmatpush1.msra.mxu0 0.0
    %141 = vmatprep.subr.mxu0 0.0
    %142 = vmatpush1.msra.mxu0 0.0
    %143 = vmatprep.subr.mxu0 0.0
    %144 = vmatpush1.msra.mxu0 0.0
    %145 = vmatprep.subr.mxu0 0.0
    %146 = vmatpush1.msra.mxu0 0.0
    %147 = vmatprep.subr.mxu0 0.0
    %148 = vmatpush1.msra.mxu0 0.0
    %149 = vmatprep.subr.mxu0 0.0
    %150 = vmatpush1.msra.mxu0 0.0
    %151 = vmatprep.subr.mxu0 0.0
    %152 = vmatpush1.msra.mxu0 0.0
    %153 = vmatprep.subr.mxu0 0.0
    %154 = vmatpush1.msra.mxu0 0.0
    %155 = vmatprep.subr.mxu0 0.0
    %156 = vmatpush1.msra.mxu0 0.0
    %157 = vmatprep.subr.mxu0 0.0
    %158 = vmatpush1.msra.mxu0 0.0
    %159 = vmatprep.subr.mxu0 0.0
    %160 = vmatpush1.msra.mxu0 0.0
    %161 = vmatprep.subr.mxu0 0.0
    %162 = vmatpush1.msra.mxu0 0.0
    %163 = vmatprep.subr.mxu0 0.0
    %164 = vmatpush1.msra.mxu0 0.0
    %165 = vmatprep.subr.mxu0 0.0
    %166 = vmatpush1.msra.mxu0 0.0
    %167 = vmatprep.subr.mxu0 0.0
    %168 = vmatpush1.msra.mxu0 0.0
    %169 = vmatprep.subr.mxu0 0.0
    %170 = vmatpush1.msra.mxu0 0.0
    %171 = vmatprep.subr.mxu0 0.0
    %172 = vmatpush1.msra.mxu0 0.0
    %173 = vmatprep.subr.mxu0 0.0
    %174 = vmatpush1.msra.mxu0 0.0
    %175 = vmatprep.mubr.f32.mxu0 0.0
    %176 = vmatmul.mubr.f32.gmra.mrb[0].mxu0 %v105
    %v177 = vpop.f32.mrb[0].mxu0
    %v178 = vadd.f32 0.0, %v177
    %v179 = vpop.f32.mrb[0].mxu0
    %180 = vdwg.mxu0
    %v182 = vsel %vm103, %v102, 0
    %v185 = vsel %vm107, %v33, 0
    %187 = vmatprep.subr.mxu0 0.0
    %188 = vmatpush1.msra.mxu0 %v29
    %189 = vmatprep.subr.mxu0 0.0
    %190 = vmatpush1.msra.mxu0 %v30
    %191 = vmatprep.subr.mxu0 0.0
    %192 = vmatpush1.msra.mxu0 %v31
    %193 = vmatprep.subr.mxu0 0.0
    %194 = vmatpush1.msra.mxu0 %v32
    %195 = vmatprep.subr.mxu0 0.0
    %196 = vmatpush1.msra.mxu0 %v185
    %197 = vmatprep.subr.mxu0 0.0
    %198 = vmatpush1.msra.mxu0 0.0
    %199 = vmatprep.subr.mxu0 0.0
    %200 = vmatpush1.msra.mxu0 0.0
    %201 = vmatprep.subr.mxu0 0.0
    %202 = vmatpush1.msra.mxu0 0.0
    %203 = vmatprep.subr.mxu0 0.0
    %204 = vmatpush1.msra.mxu0 0.0
    %205 = vmatprep.subr.mxu0 0.0
    %206 = vmatpush1.msra.mxu0 0.0
    %207 = vmatprep.subr.mxu0 0.0
    %208 = vmatpush1.msra.mxu0 0.0
    %209 = vmatprep.subr.mxu0 0.0
    %210 = vmatpush1.msra.mxu0 0.0
    %211 = vmatprep.subr.mxu0 0.0
    %212 = vmatpush1.msra.mxu0 0.0
    %213 = vmatprep.subr.mxu0 0.0
    %214 = vmatpush1.msra.mxu0 0.0
    %215 = vmatprep.subr.mxu0 0.0
    %216 = vmatpush1.msra.mxu0 0.0
    %217 = vmatprep.subr.mxu0 0.0
    %218 = vmatpush1.msra.mxu0 0.0
    %219 = vmatprep.subr.mxu0 0.0
    %220 = vmatpush1.msra.mxu0 0.0
    %221 = vmatprep.subr.mxu0 0.0
    %222 = vmatpush1.msra.mxu0 0.0
    %223 = vmatprep.subr.mxu0 0.0
    %224 = vmatpush1.msra.mxu0 0.0
    %225 = vmatprep.subr.mxu0 0.0
    %226 = vmatpush1.msra.mxu0 0.0
    %227 = vmatprep.subr.mxu0 0.0
    %228 = vmatpush1.msra.mxu0 0.0
    %229 = vmatprep.subr.mxu0 0.0
    %230 = vmatpush1.msra.mxu0 0.0
    %231 = vmatprep.subr.mxu0 0.0
    %232 = vmatpush1.msra.mxu0 0.0
    %233 = vmatprep.subr.mxu0 0.0
    %234 = vmatpush1.msra.mxu0 0.0
    %235 = vmatprep.subr.mxu0 0.0
    %236 = vmatpush1.msra.mxu0 0.0
    %237 = vmatprep.subr.mxu0 0.0
    %238 = vmatpush1.msra.mxu0 0.0
    %239 = vmatprep.subr.mxu0 0.0
    %240 = vmatpush1.msra.mxu0 0.0
    %241 = vmatprep.subr.mxu0 0.0
    %242 = vmatpush1.msra.mxu0 0.0
    %243 = vmatprep.subr.mxu0 0.0
    %244 = vmatpush1.msra.mxu0 0.0
    %245 = vmatprep.subr.mxu0 0.0
    %246 = vmatpush1.msra.mxu0 0.0
    %247 = vmatprep.subr.mxu0 0.0
    %248 = vmatpush1.msra.mxu0 0.0
    %249 = vmatprep.subr.mxu0 0.0
    %250 = vmatpush1.msra.mxu0 0.0
    %251 = vmatprep.mubr.f32.mxu0 0.0
    %252 = vmatmul.mubr.f32.gmra.mrb[0].mxu0 %v182
    %v253 = vpop.f32.mrb[0].mxu0
    %v254 = vadd.f32 0.0, %v253
    %v255 = vpop.f32.mrb[0].mxu0
    %256 = vdwg.mxu0
    %v259 = vrot.slane %v254, 7
    %vm260 = vcmask 1041409
    %v261 = vsel %vm260, %v259, %v178
    %v263 = vrot.slane %v178, 1
    %v264 = vsel %vm260, %v254, %v263
    %265 = vrot.lane.b32.xlu0 %v264, 32
    %v266 = vpop.permute.xlu0 %265
    %vm268 = vcmask 261120
    %v269 = vsel %vm268, %v261, %v266
    %vm270 = vcmask 517120
    %271 = vst.msk [vmem:[#allocation2] sm:$0x3] %vm270, %v269
    // Predicated region
    $region14: #{tpu_custom_call.1} parent=1 // pred_check
      _
    $region15: #{tpu_custom_call.1} parent=1 // pred_check_branch
      %273 = sbr.rel (0) target = $region17
    $region16: #{tpu_custom_call.1} parent=1 // pred_region
      %s275 = ssub.s32 32, 32
      %276 = vsyncadd [#allocation3], %s275
      %s278 = sshll.u32 [#allocation2], 4
      %s279 = int_to_ptr.vmem [resolvable:$true] %s278
      %281 = dma.vmem_to_hbm [thread:$0]  %s279, 32, %s3, [#allocation3]
    $region17: #{tpu_custom_call.1} parent=1 // pred_fallthru
      _
    // Predicated region
    $region18: #{tpu_custom_call.1} parent=1 // pred_check
      _
    $region19: #{tpu_custom_call.1} parent=1 // pred_check_branch
      %283 = sbr.rel (0) target = $region21
    $region20: #{tpu_custom_call.1} parent=1 // pred_region
      %284 = dma.done [#allocation3], 32
    $region21: #{tpu_custom_call.1} parent=1 // pred_fallthru
      _
    %285 = vsyncpa [#allocation3], 1

</llo_original>
